<compile_context>
chip_gen: v5e
topology: v5e:2x2
jax: 0.10.0
libtpu: 0.0.40
codegen_flags: <defaults>
</compile_context>

<pallas_src>
import jax
import jax.numpy as jnp
from jax.experimental import pallas as pl
from jax.experimental.pallas import tpu as pltpu


def _pick_vmem_limit():
    """~3/4 of physical VMEM (96 MiB on v5e/v6e, 48 MiB on v7x), safe fallback."""
    try:
        cap = pltpu.get_tpu_info().vmem_capacity_bytes
        return min(96 * 1024 * 1024, int(cap) * 3 // 4)
    except Exception:
        return 48 * 1024 * 1024


def _make_fused_conv_kernel(K, padding, L, L_out, C3_out, compute_dtype, x_dtype):
    """Per-batch-tile kernel: fused 3-branch stride-1 Conv1d via K tap matmuls."""
    Lw = max(L, L_out)  # working lane width (L_out > L only when padding > (K-1)/2)

    def kernel(x_ref, w_ref, b_ref, o_ref):
        # x_ref: (b_tile, 3*C_in, L)        full channel slab for b_tile batch rows
        # w_ref: (K, 3*C_out, 3*C_in)       block-diagonal per-tap fused weights
        # b_ref: (3*C_out, 1)               fused bias, f32
        # o_ref: (b_tile, 3*C_out, L_out)   final concat layout (raw, abs, fft)
        b_tile = x_ref.shape[0]

        # ---- hoisted, batch-loop-invariant values (computed once per grid step) ----
        bias = jnp.broadcast_to(b_ref[...].astype(jnp.float32), (C3_out, L_out))
        lane = jax.lax.broadcasted_iota(jnp.int32, (1, L_out), 1)

        w_taps = [w_ref[k] for k in range(K)]            # tiny, read once
        tap_meta = []
        for k in range(K):
            # conv zero-padding realised as a roll of the tap result + edge mask
            lo = max(0, padding - k)                     # first valid output lane
            hi = min(L_out, L + padding - k)             # one past last valid lane
            shift = (padding - k) % Lw
            mask = (lane >= lo) & (lane < hi) if (lo > 0 or hi < L_out) else None
            tap_meta.append((shift, mask))

        # ---- per-batch-row work ----
        def body(bi, carry):
            xb = x_ref[bi]                               # (3*C_in, L)
            if compute_dtype != x_dtype:
                xb = xb.astype(compute_dtype)            # cast only the MXU operand
            acc = bias                                   # (3*C_out, L_out) f32
            for k in range(K):                           # static unroll over taps
                p = jnp.dot(w_taps[k], xb,
                            preferred_element_type=jnp.float32)   # (3*C_out, L)
                if Lw > L:                               # rare: padding > (K-1)/2
                    p = jnp.concatenate(
                        [p, jnp.zeros((C3_out, Lw - L), p.dtype)], axis=1)
                shift, mask = tap_meta[k]
                if shift != 0:
                    p = pltpu.roll(p, shift, axis=1)     # XLU lane rotation (~free)
                if Lw > L_out:
                    p = p[:, :L_out]
                if mask is not None:
                    p = jnp.where(mask, p, 0.0)          # zero the padded border
                acc = acc + p
            # one full-row store, L_out on the lane axis (lane-dense for L_out % 128 == 0)
            o_ref[bi] = acc.astype(o_ref.dtype)
            return carry

        jax.lax.fori_loop(0, b_tile, body, None, unroll=True)

    return kernel


def complex_conv(x, w_raw, b_raw, w_abs, b_abs, w_fft, b_fft,
                 *, kernel_size, stride=1, padding=0,
                 b_tile=8, compute_dtype=None):
    """Pallas implementation of ComplexConv.forward.

    x: (B, 3*C_in, L)  ->  (B, 3*C_out, L_out), output channel order (raw, abs, fft).
    compute_dtype: pass jnp.bfloat16 on v6e/v7x if the accuracy budget allows
                   (accumulation stays f32; only the matmul operands are cast).
    """
    assert stride == 1, "only stride=1 implemented"
    B, C3, L = x.shape
    assert C3 % 3 == 0
    C_in = C3 // 3
    C_out, C_in_w, K = w_raw.shape
    assert C_in_w == C_in and K == kernel_size
    L_out = L + 2 * padding - K + 1
    assert L_out > 0

    if compute_dtype is None:
        compute_dtype = x.dtype
    C3_out = 3 * C_out

    # Block-diagonal per-tap fused weights: W_bd[k, g*C_out+o, g*C_in+c] = w_g[o, c, k].
    # (Tiny arrays; built once in the wrapper.)
    w_stk = jnp.stack([w_raw, w_abs, w_fft], axis=0)             # (3, C_out, C_in, K)
    w_bd = jnp.zeros((K, C3_out, 3 * C_in), dtype=compute_dtype)
    for g in range(3):
        w_bd = w_bd.at[:, g * C_out:(g + 1) * C_out,
                       g * C_in:(g + 1) * C_in].set(
            jnp.transpose(w_stk[g], (2, 0, 1)).astype(compute_dtype))
    b_cat = jnp.concatenate([b_raw, b_abs, b_fft])[:, None].astype(jnp.float32)

    # Batch tiling: clamp to a divisor of B so no step computes on padded garbage
    # rows.  (On v6e, with small channel counts, b_tile=32-64 amortizes the
    # ~0.35us/step overhead better; on v7x prefer an even tile count so the
    # 2 TensorCores split the "parallel" batch axis evenly.)
    b_tile = max(1, min(b_tile, B))
    while B % b_tile != 0:
        b_tile -= 1
    n_b_tiles = B // b_tile

    kernel = _make_fused_conv_kernel(K, padding, L, L_out, C3_out,
                                     compute_dtype, x.dtype)

    out = pl.pallas_call(
        kernel,
        out_shape=jax.ShapeDtypeStruct((B, C3_out, L_out), x.dtype),
        grid_spec=pltpu.PrefetchScalarGridSpec(
            num_scalar_prefetch=0,
            grid=(n_b_tiles,),
            in_specs=[
                # full channel slab for b_tile batch rows; no stack/pad/copy of x
                pl.BlockSpec((b_tile, C3, L), lambda bi: (bi, 0, 0)),
                # constant block index -> weights/bias stay resident, no re-DMA
                pl.BlockSpec((K, C3_out, 3 * C_in), lambda bi: (0, 0, 0)),
                pl.BlockSpec((C3_out, 1), lambda bi: (0, 0)),
            ],
            # Writes land directly in the final (B, 3*C_out, L_out) concat layout.
            out_specs=pl.BlockSpec((b_tile, C3_out, L_out), lambda bi: (bi, 0, 0)),
        ),
        compiler_params=pltpu.CompilerParams(
            dimension_semantics=("parallel",),
            vmem_limit_bytes=_pick_vmem_limit(),
        ),
    )(x, w_bd, b_cat)

    return out


def _reference(x, w_raw, b_raw, w_abs, b_abs, w_fft, b_fft,
               *, kernel_size, padding=0):
    """Plain-JAX reference (lax conv) mirroring the PyTorch forward."""
    C_in = x.shape[1] // 3
    parts = [x[:, 0:C_in, :], x[:, C_in:2 * C_in, :], x[:, 2 * C_in:, :]]
    weights = [(w_raw, b_raw), (w_abs, b_abs), (w_fft, b_fft)]
    outs = []
    for xp, (w, b) in zip(parts, weights):
        y = jax.lax.conv_general_dilated(
            xp, w, window_strides=(1,), padding=[(padding, padding)],
            dimension_numbers=("NCH", "OIH", "NCH"))
        outs.append(y + b[None, :, None])
    return jnp.concatenate(outs, axis=1)


if __name__ == "__main__":
    # Small shapes consistent with the module: per-branch C_in=4 -> x has 12 channels.
    B, C_in, C_out, L, K, PAD = 2, 4, 4, 16, 3, 1

    key = jax.random.PRNGKey(0)
    kx, k1, k2, k3, k4, k5, k6 = jax.random.split(key, 7)

    x = jax.random.normal(kx, (B, 3 * C_in, L), dtype=jnp.float32)

    scale = 1.0 / jnp.sqrt(C_in * K)
    w_raw = jax.random.normal(k1, (C_out, C_in, K), jnp.float32) * scale
    b_raw = jax.random.normal(k2, (C_out,), jnp.float32) * scale
    w_abs = jax.random.normal(k3, (C_out, C_in, K), jnp.float32) * scale
    b_abs = jax.random.normal(k4, (C_out,), jnp.float32) * scale
    w_fft = jax.random.normal(k5, (C_out, C_in, K), jnp.float32) * scale
    b_fft = jax.random.normal(k6, (C_out,), jnp.float32) * scale

    out = complex_conv(x, w_raw, b_raw, w_abs, b_abs, w_fft, b_fft,
                       kernel_size=K, stride=1, padding=PAD)
    out = jax.block_until_ready(out)

    ref = _reference(x, w_raw, b_raw, w_abs, b_abs, w_fft, b_fft,
                     kernel_size=K, padding=PAD)

    assert out.shape == (B, 3 * C_out, L)  # L_out == L since pad=1, K=3
    assert jnp.allclose(out, ref, atol=1e-5, rtol=1e-5), "mismatch vs reference"

    print("KERNEL_OK")
</pallas_src>

<mosaic_0001>
module attributes {stable_mosaic.version = 11 : i64} {
  func.func @kernel(%arg0: i32, %arg1: memref<2x12x16xf32, #tpu.memory_space<vmem>>, %arg2: memref<3x12x12xf32, #tpu.memory_space<vmem>>, %arg3: memref<12x1xf32, #tpu.memory_space<vmem>>, %arg4: memref<2x12x16xf32, #tpu.memory_space<vmem>>) attributes {dimension_semantics = [#tpu.dimension_semantics<parallel>], iteration_bounds = array<i64: 1>, scalar_prefetch = 0 : i64, scratch_operands = 0 : i64, tpu.core_type = #tpu.core_type<tc>, window_params = [{transform_indices = @transform_0, window_bounds = array<i64: 2, 12, 16>}, {pipeline_mode = #tpu.pipeline_mode<synchronous>, transform_indices = @transform_1, window_bounds = array<i64: 3, 12, 12>}, {pipeline_mode = #tpu.pipeline_mode<synchronous>, transform_indices = @transform_2, window_bounds = array<i64: 12, 1>}, {transform_indices = @transform_3, window_bounds = array<i64: 2, 12, 16>}]} {
    %c0 = arith.constant 0 : index
    %c0_0 = arith.constant 0 : index
    %0 = vector.load %arg3[%c0, %c0_0] : memref<12x1xf32, #tpu.memory_space<vmem>>, vector<12x1xf32>
    %1 = vector.shape_cast %0 : vector<12x1xf32> to vector<12x1xf32>
    %2 = vector.broadcast %1 : vector<12x1xf32> to vector<12x16xf32>
    %3 = tpu.iota {dimensions = array<i32: 1>} : vector<1x16xi32>
    %c0_1 = arith.constant 0 : index
    %c0_2 = arith.constant 0 : index
    %c0_3 = arith.constant 0 : index
    %4 = vector.load %arg2[%c0_1, %c0_2, %c0_3] : memref<3x12x12xf32, #tpu.memory_space<vmem>>, vector<1x12x12xf32>
    %5 = vector.shape_cast %4 : vector<1x12x12xf32> to vector<12x12xf32>
    %c1 = arith.constant 1 : index
    %c0_4 = arith.constant 0 : index
    %c0_5 = arith.constant 0 : index
    %6 = vector.load %arg2[%c1, %c0_4, %c0_5] : memref<3x12x12xf32, #tpu.memory_space<vmem>>, vector<1x12x12xf32>
    %7 = vector.shape_cast %6 : vector<1x12x12xf32> to vector<12x12xf32>
    %c2 = arith.constant 2 : index
    %c0_6 = arith.constant 0 : index
    %c0_7 = arith.constant 0 : index
    %8 = vector.load %arg2[%c2, %c0_6, %c0_7] : memref<3x12x12xf32, #tpu.memory_space<vmem>>, vector<1x12x12xf32>
    %9 = vector.shape_cast %8 : vector<1x12x12xf32> to vector<12x12xf32>
    %c1_i32 = arith.constant 1 : i32
    %10 = vector.broadcast %c1_i32 : i32 to vector<1x16xi32>
    %11 = arith.cmpi sge, %3, %10 : vector<1x16xi32>
    %c16_i32 = arith.constant 16 : i32
    %12 = vector.broadcast %c16_i32 : i32 to vector<1x16xi32>
    %13 = arith.cmpi slt, %3, %12 : vector<1x16xi32>
    %14 = arith.andi %11, %13 : vector<1x16xi1>
    %c0_i32 = arith.constant 0 : i32
    %15 = vector.broadcast %c0_i32 : i32 to vector<1x16xi32>
    %16 = arith.cmpi sge, %3, %15 : vector<1x16xi32>
    %c15_i32 = arith.constant 15 : i32
    %17 = vector.broadcast %c15_i32 : i32 to vector<1x16xi32>
    %18 = arith.cmpi slt, %3, %17 : vector<1x16xi32>
    %19 = arith.andi %16, %18 : vector<1x16xi1>
    %c0_i32_8 = arith.constant 0 : i32
    %20 = arith.index_cast %c0_i32_8 : i32 to index
    %c0_9 = arith.constant 0 : index
    %c0_10 = arith.constant 0 : index
    %21 = vector.load %arg1[%20, %c0_9, %c0_10] : memref<2x12x16xf32, #tpu.memory_space<vmem>>, vector<1x12x16xf32>
    %22 = vector.shape_cast %21 : vector<1x12x16xf32> to vector<12x16xf32>
    %cst = arith.constant dense<0.000000e+00> : vector<12x16xf32>
    %23 = tpu.matmul %5, %22, %cst {dimension_numbers = #tpu.dot_dimension_numbers<[1], [0], [0], [1], [0, 0, 1, 1], [], []>} : vector<12x12xf32>, vector<12x16xf32>, vector<12x16xf32> -> vector<12x16xf32>
    %c1_i32_11 = arith.constant 1 : i32
    %24 = tpu.dynamic_rotate %23 by %c1_i32_11 dim 1 : vector<12x16xf32>, i32 -> vector<12x16xf32>
    %cst_12 = arith.constant 0.000000e+00 : f32
    %25 = vector.shape_cast %14 : vector<1x16xi1> to vector<1x16xi1>
    %26 = vector.broadcast %25 : vector<1x16xi1> to vector<12x16xi1>
    %27 = vector.broadcast %cst_12 : f32 to vector<12x16xf32>
    %28 = arith.select %26, %24, %27 : vector<12x16xi1>, vector<12x16xf32>
    %29 = arith.addf %2, %28 : vector<12x16xf32>
    %cst_13 = arith.constant dense<0.000000e+00> : vector<12x16xf32>
    %30 = tpu.matmul %7, %22, %cst_13 {dimension_numbers = #tpu.dot_dimension_numbers<[1], [0], [0], [1], [0, 0, 1, 1], [], []>} : vector<12x12xf32>, vector<12x16xf32>, vector<12x16xf32> -> vector<12x16xf32>
    %31 = arith.addf %29, %30 : vector<12x16xf32>
    %cst_14 = arith.constant dense<0.000000e+00> : vector<12x16xf32>
    %32 = tpu.matmul %9, %22, %cst_14 {dimension_numbers = #tpu.dot_dimension_numbers<[1], [0], [0], [1], [0, 0, 1, 1], [], []>} : vector<12x12xf32>, vector<12x16xf32>, vector<12x16xf32> -> vector<12x16xf32>
    %c15_i32_15 = arith.constant 15 : i32
    %33 = tpu.dynamic_rotate %32 by %c15_i32_15 dim 1 : vector<12x16xf32>, i32 -> vector<12x16xf32>
    %cst_16 = arith.constant 0.000000e+00 : f32
    %34 = vector.shape_cast %19 : vector<1x16xi1> to vector<1x16xi1>
    %35 = vector.broadcast %34 : vector<1x16xi1> to vector<12x16xi1>
    %36 = vector.broadcast %cst_16 : f32 to vector<12x16xf32>
    %37 = arith.select %35, %33, %36 : vector<12x16xi1>, vector<12x16xf32>
    %38 = arith.addf %31, %37 : vector<12x16xf32>
    %39 = arith.index_cast %c0_i32_8 : i32 to index
    %c0_17 = arith.constant 0 : index
    %c0_18 = arith.constant 0 : index
    %40 = vector.load %arg4[%39, %c0_17, %c0_18] : memref<2x12x16xf32, #tpu.memory_space<vmem>>, vector<1x12x16xf32>
    %41 = vector.shape_cast %40 : vector<1x12x16xf32> to vector<12x16xf32>
    %42 = vector.shape_cast %38 : vector<12x16xf32> to vector<1x12x16xf32>
    tpu.vector_store %arg4[%39, %c0_17, %c0_18], %42 {strides = array<i32>} : memref<2x12x16xf32, #tpu.memory_space<vmem>>, vector<1x12x16xf32>,
    %c1_i32_19 = arith.constant 1 : i32
    %43 = arith.index_cast %c1_i32_19 : i32 to index
    %c0_20 = arith.constant 0 : index
    %c0_21 = arith.constant 0 : index
    %44 = vector.load %arg1[%43, %c0_20, %c0_21] : memref<2x12x16xf32, #tpu.memory_space<vmem>>, vector<1x12x16xf32>
    %45 = vector.shape_cast %44 : vector<1x12x16xf32> to vector<12x16xf32>
    %cst_22 = arith.constant dense<0.000000e+00> : vector<12x16xf32>
    %46 = tpu.matmul %5, %45, %cst_22 {dimension_numbers = #tpu.dot_dimension_numbers<[1], [0], [0], [1], [0, 0, 1, 1], [], []>} : vector<12x12xf32>, vector<12x16xf32>, vector<12x16xf32> -> vector<12x16xf32>
    %c1_i32_23 = arith.constant 1 : i32
    %47 = tpu.dynamic_rotate %46 by %c1_i32_23 dim 1 : vector<12x16xf32>, i32 -> vector<12x16xf32>
    %cst_24 = arith.constant 0.000000e+00 : f32
    %48 = vector.shape_cast %14 : vector<1x16xi1> to vector<1x16xi1>
    %49 = vector.broadcast %48 : vector<1x16xi1> to vector<12x16xi1>
    %50 = vector.broadcast %cst_24 : f32 to vector<12x16xf32>
    %51 = arith.select %49, %47, %50 : vector<12x16xi1>, vector<12x16xf32>
    %52 = arith.addf %2, %51 : vector<12x16xf32>
    %cst_25 = arith.constant dense<0.000000e+00> : vector<12x16xf32>
    %53 = tpu.matmul %7, %45, %cst_25 {dimension_numbers = #tpu.dot_dimension_numbers<[1], [0], [0], [1], [0, 0, 1, 1], [], []>} : vector<12x12xf32>, vector<12x16xf32>, vector<12x16xf32> -> vector<12x16xf32>
    %54 = arith.addf %52, %53 : vector<12x16xf32>
    %cst_26 = arith.constant dense<0.000000e+00> : vector<12x16xf32>
    %55 = tpu.matmul %9, %45, %cst_26 {dimension_numbers = #tpu.dot_dimension_numbers<[1], [0], [0], [1], [0, 0, 1, 1], [], []>} : vector<12x12xf32>, vector<12x16xf32>, vector<12x16xf32> -> vector<12x16xf32>
    %c15_i32_27 = arith.constant 15 : i32
    %56 = tpu.dynamic_rotate %55 by %c15_i32_27 dim 1 : vector<12x16xf32>, i32 -> vector<12x16xf32>
    %cst_28 = arith.constant 0.000000e+00 : f32
    %57 = vector.shape_cast %19 : vector<1x16xi1> to vector<1x16xi1>
    %58 = vector.broadcast %57 : vector<1x16xi1> to vector<12x16xi1>
    %59 = vector.broadcast %cst_28 : f32 to vector<12x16xf32>
    %60 = arith.select %58, %56, %59 : vector<12x16xi1>, vector<12x16xf32>
    %61 = arith.addf %54, %60 : vector<12x16xf32>
    %62 = arith.index_cast %c1_i32_19 : i32 to index
    %c0_29 = arith.constant 0 : index
    %c0_30 = arith.constant 0 : index
    %63 = vector.load %arg4[%62, %c0_29, %c0_30] : memref<2x12x16xf32, #tpu.memory_space<vmem>>, vector<1x12x16xf32>
    %64 = vector.shape_cast %63 : vector<1x12x16xf32> to vector<12x16xf32>
    %65 = vector.shape_cast %61 : vector<12x16xf32> to vector<1x12x16xf32>
    tpu.vector_store %arg4[%62, %c0_29, %c0_30], %65 {strides = array<i32>} : memref<2x12x16xf32, #tpu.memory_space<vmem>>, vector<1x12x16xf32>,
    %c2_i32 = arith.constant 2 : i32
    return
  }
  func.func @transform_0(%arg0: i32) -> (i32, i32, i32) {
    %c0_i32 = arith.constant 0 : i32
    %c0_i32_0 = arith.constant 0 : i32
    %c0_i32_1 = arith.constant 0 : i32
    return %arg0, %c0_i32, %c0_i32_0 : i32, i32, i32
  }
  func.func @transform_1(%arg0: i32) -> (i32, i32, i32) {
    %c0_i32 = arith.constant 0 : i32
    %c0_i32_0 = arith.constant 0 : i32
    %c0_i32_1 = arith.constant 0 : i32
    %c0_i32_2 = arith.constant 0 : i32
    return %c0_i32, %c0_i32_0, %c0_i32_1 : i32, i32, i32
  }
  func.func @transform_2(%arg0: i32) -> (i32, i32) {
    %c0_i32 = arith.constant 0 : i32
    %c0_i32_0 = arith.constant 0 : i32
    %c0_i32_1 = arith.constant 0 : i32
    return %c0_i32, %c0_i32_0 : i32, i32
  }
  func.func @transform_3(%arg0: i32) -> (i32, i32, i32) {
    %c0_i32 = arith.constant 0 : i32
    %c0_i32_0 = arith.constant 0 : i32
    %c0_i32_1 = arith.constant 0 : i32
    return %arg0, %c0_i32, %c0_i32_0 : i32, i32, i32
  }
}

</mosaic_0001>

<llo_original>
// kernel: tpu_custom_call.1
$region0: #{tpu_custom_call.1}
  #allocation0 [shape = 'u32[]', space=smem, size = 0x4, offset = 0x4, fixed_abs, tag = 'smem constant byte address 0x4 - core index']
  #allocation1 [shape = 'u32[72,128]{1,0:T(1,128)}', space=vmem, size = 0x9000, scoped, tag = 'internal scratch']
  %s0 = inlined_call_operand.vmem [shape: f32[2,12,16], index: 0, kind: input, shape index: {}]
  %s1 = inlined_call_operand.vmem [shape: f32[3,12,12], index: 1, kind: input, shape index: {}]
  %s2 = inlined_call_operand.vmem [shape: f32[12,1], index: 2, kind: input, shape index: {}]
  %s3 = inlined_call_operand.vmem [shape: f32[2,12,16], index: 3, kind: output, shape index: {}]
  %s4 = sld [smem:[#allocation0]]
  $region22: #{tpu_custom_call.1} parent=0
    _
  %s6 = ssub.s32 1, %s4
  %s7 = scalar_select 0, %s6, %s4
  // Predicated region
  $region2: #{tpu_custom_call.1} parent=0 // pred_check
    _
  $region3: #{tpu_custom_call.1} parent=0 // pred_check_branch
    %9 = sbr.rel (0) target = $region5
  $region4: #{tpu_custom_call.1} parent=0 // pred_region
    _
  $region5: #{tpu_custom_call.1} parent=0 // pred_fallthru
    _
  // Predicated region
  $region6: #{tpu_custom_call.1} parent=0 // pred_check
    _
  $region7: #{tpu_custom_call.1} parent=0 // pred_check_branch
    %11 = sbr.rel (0) target = $region9
  $region8: #{tpu_custom_call.1} parent=0 // pred_region
    _
  $region9: #{tpu_custom_call.1} parent=0 // pred_fallthru
    _
  // Predicated region
  $region10: #{tpu_custom_call.1} parent=0 // pred_check
    _
  $region11: #{tpu_custom_call.1} parent=0 // pred_check_branch
    %13 = sbr.rel (0) target = $region13
  $region12: #{tpu_custom_call.1} parent=0 // pred_region
    _
  $region13: #{tpu_custom_call.1} parent=0 // pred_fallthru
    _
  %v14 = vld [vmem:[%s2] sm:$0xff]
  %v15 = vld [vmem:[%s2 + $0x8] sm:$0xf]
  %17 = vset.pattern.permute.xlu0 0
  %18 = vperm.xlu0 %17, %v14
  %v19 = vpop.permute.xlu0 %18
  %22 = vset.pattern.permute.xlu0 0
  %23 = vperm.xlu0 %22, %v15
  %v24 = vpop.permute.xlu0 %23
  %v26 = vlaneseq
  %v27 = vand.u32 %v26, 127
  %v28 = vld [vmem:[%s1] sm:$0xff]
  %v29 = vld [vmem:[%s1 + $0x8] sm:$0xf]
  %s30 = scalar_lea.vmem %s1, 16
  %v31 = vld [vmem:[%s30] sm:$0xff]
  %v32 = vld [vmem:[%s30 + $0x8] sm:$0xf]
  %s33 = scalar_lea.vmem %s1, 32
  %v34 = vld [vmem:[%s33] sm:$0xff]
  %v35 = vld [vmem:[%s33 + $0x8] sm:$0xf]
  %vm36 = vcmp.ge.s32.totalorder %v27, 1
  %vm37 = vcmp.lt.s32.totalorder %v27, 16
  %vm38 = vmand %vm36, %vm37
  %vm39 = vcmp.ge.s32.totalorder %v27, 0
  %vm40 = vcmp.lt.s32.totalorder %v27, 15
  %vm41 = vmand %vm39, %vm40
  %v42 = vld [vmem:[%s0] sm:$0xff]
  %v43 = vld [vmem:[%s0 + $0x8] sm:$0xf]
  %vm44 = vcmask 97280
  %v46 = vsel %vm44, %v28, 0
  %v49 = vsel %vm44, %v29, 0
  %vm51 = vcmask 1043456
  %v53 = vsel %vm51, %v43, 0
  %55 = vmatpush.msra.mxu0 0.0
  %56 = vmatpush.msra.mxu0 0.0
  %57 = vmatpush.msra.mxu0 0.0
  %58 = vmatpush.msra.mxu0 0.0
  %59 = vmatpush.msra.mxu0 0.0
  %60 = vmatpush.msra.mxu0 0.0
  %61 = vmatpush.msra.mxu0 0.0
  %62 = vmatpush.msra.mxu0 0.0
  %63 = vmatpush.msra.mxu0 0.0
  %64 = vmatpush.msra.mxu0 0.0
  %65 = vmatpush.msra.mxu0 0.0
  %66 = vmatpush.msra.mxu0 0.0
  %67 = vmatpush.msra.mxu0 0.0
  %68 = vmatpush.msra.mxu0 0.0
  %69 = vmatpush.msra.mxu0 %v53
  %70 = vmatpush.msra.mxu0 %v42
  %71 = vmatmul.f32.gmra.mxu0 %v46
  %v72 = vpop.f32.mrf.mxu0
  %v73 = vadd.f32 0.0, %v72
  %74 = vmatmul.f32.gmra.mxu0 %v49
  %v75 = vpop.f32.mrf.mxu0
  %v76 = vadd.f32 0.0, %v75
  %77 = vdwg.mxu0
  %vm78 = vcmask 1047680
  %79 = vrot.lane.b32.xlu0 %v73, 16
  %v80 = vpop.permute.xlu0 %79
  %v81 = vsel %vm78, %v80, %v73
  %82 = vrot.lane.b32.xlu0 %v76, 16
  %v83 = vpop.permute.xlu0 %82
  %v84 = vsel %vm78, %v83, %v76
  %85 = vrot.lane.b32.xlu0 %v81, 16
  %v86 = vpop.permute.xlu0 %85
  %87 = vrot.lane.b32.xlu0 %v84, 16
  %v88 = vpop.permute.xlu0 %87
  %v89 = vsel %vm78, %v86, %v73
  %v90 = vsel %vm78, %v88, %v76
  %v91 = vsel %vm38, 1, 0
  %vm92 = vcmp.eq.s32.totalorder %v91, 1
  %95 = vrot.lane.b32.xlu0 %v89, 113
  %v96 = vpop.permute.xlu0 %95
  %97 = vrot.lane.b32.xlu0 %v90, 113
  %v98 = vpop.permute.xlu0 %97
  %v101 = vsel %vm92, %v96, 0.0
  %v102 = vsel %vm92, %v98, 0.0
  %v103 = vadd.f32 %v19, %v101
  %v104 = vadd.f32 %v24, %v102
  %v106 = vsel %vm44, %v31, 0
  %v109 = vsel %vm44, %v32, 0
  %111 = vmatpush.msra.mxu0 0.0
  %112 = vmatpush.msra.mxu0 0.0
  %113 = vmatpush.msra.mxu0 0.0
  %114 = vmatpush.msra.mxu0 0.0
  %115 = vmatpush.msra.mxu0 0.0
  %116 = vmatpush.msra.mxu0 0.0
  %117 = vmatpush.msra.mxu0 0.0
  %118 = vmatpush.msra.mxu0 0.0
  %119 = vmatpush.msra.mxu0 0.0
  %120 = vmatpush.msra.mxu0 0.0
  %121 = vmatpush.msra.mxu0 0.0
  %122 = vmatpush.msra.mxu0 0.0
  %123 = vmatpush.msra.mxu0 0.0
  %124 = vmatpush.msra.mxu0 0.0
  %125 = vmatpush.msra.mxu0 %v53
  %126 = vmatpush.msra.mxu0 %v42
  %127 = vmatmul.f32.gmra.mxu0 %v106
  %v128 = vpop.f32.mrf.mxu0
  %v129 = vadd.f32 0.0, %v128
  %130 = vmatmul.f32.gmra.mxu0 %v109
  %v131 = vpop.f32.mrf.mxu0
  %v132 = vadd.f32 0.0, %v131
  %133 = vdwg.mxu0
  %v134 = vadd.f32 %v103, %v129
  %v135 = vadd.f32 %v104, %v132
  %v137 = vsel %vm44, %v34, 0
  %v140 = vsel %vm44, %v35, 0
  %142 = vmatpush.msra.mxu0 0.0
  %143 = vmatpush.msra.mxu0 0.0
  %144 = vmatpush.msra.mxu0 0.0
  %145 = vmatpush.msra.mxu0 0.0
  %146 = vmatpush.msra.mxu0 0.0
  %147 = vmatpush.msra.mxu0 0.0
  %148 = vmatpush.msra.mxu0 0.0
  %149 = vmatpush.msra.mxu0 0.0
  %150 = vmatpush.msra.mxu0 0.0
  %151 = vmatpush.msra.mxu0 0.0
  %152 = vmatpush.msra.mxu0 0.0
  %153 = vmatpush.msra.mxu0 0.0
  %154 = vmatpush.msra.mxu0 0.0
  %155 = vmatpush.msra.mxu0 0.0
  %156 = vmatpush.msra.mxu0 %v53
  %157 = vmatpush.msra.mxu0 %v42
  %158 = vmatmul.f32.gmra.mxu0 %v137
  %v159 = vpop.f32.mrf.mxu0
  %v160 = vadd.f32 0.0, %v159
  %161 = vmatmul.f32.gmra.mxu0 %v140
  %v162 = vpop.f32.mrf.mxu0
  %v163 = vadd.f32 0.0, %v162
  %164 = vdwg.mxu0
  %165 = vrot.lane.b32.xlu0 %v160, 16
  %v166 = vpop.permute.xlu0 %165
  %v167 = vsel %vm78, %v166, %v160
  %168 = vrot.lane.b32.xlu0 %v163, 16
  %v169 = vpop.permute.xlu0 %168
  %v170 = vsel %vm78, %v169, %v163
  %171 = vrot.lane.b32.xlu0 %v167, 16
  %v172 = vpop.permute.xlu0 %171
  %173 = vrot.lane.b32.xlu0 %v170, 16
  %v174 = vpop.permute.xlu0 %173
  %v175 = vsel %vm78, %v172, %v160
  %v176 = vsel %vm78, %v174, %v163
  %v177 = vsel %vm41, 1, 0
  %vm178 = vcmp.eq.s32.totalorder %v177, 1
  %181 = vrot.lane.b32.xlu0 %v175, 127
  %v182 = vpop.permute.xlu0 %181
  %183 = vrot.lane.b32.xlu0 %v176, 127
  %v184 = vpop.permute.xlu0 %183
  %v187 = vsel %vm178, %v182, 0.0
  %v188 = vsel %vm178, %v184, 0.0
  %v189 = vadd.f32 %v134, %v187
  %v190 = vadd.f32 %v135, %v188
  %vm191 = vcmask 130048
  %192 = vst.msk [vmem:[%s3] sm:$0xff] %vm191, %v189
  %vm193 = vcmask 125952
  %194 = vst.msk [vmem:[%s3 + $0x8] sm:$0xf] %vm193, %v190
  %s195 = scalar_lea.vmem %s0, 16
  %v196 = vld [vmem:[%s195] sm:$0xff]
  %v197 = vld [vmem:[%s195 + $0x8] sm:$0xf]
  %v199 = vsel %vm51, %v197, 0
  %201 = vmatpush.msra.mxu0 0.0
  %202 = vmatpush.msra.mxu0 0.0
  %203 = vmatpush.msra.mxu0 0.0
  %204 = vmatpush.msra.mxu0 0.0
  %205 = vmatpush.msra.mxu0 0.0
  %206 = vmatpush.msra.mxu0 0.0
  %207 = vmatpush.msra.mxu0 0.0
  %208 = vmatpush.msra.mxu0 0.0
  %209 = vmatpush.msra.mxu0 0.0
  %210 = vmatpush.msra.mxu0 0.0
  %211 = vmatpush.msra.mxu0 0.0
  %212 = vmatpush.msra.mxu0 0.0
  %213 = vmatpush.msra.mxu0 0.0
  %214 = vmatpush.msra.mxu0 0.0
  %215 = vmatpush.msra.mxu0 %v199
  %216 = vmatpush.msra.mxu0 %v196
  %217 = vmatmul.f32.gmra.mxu0 %v46
  %v218 = vpop.f32.mrf.mxu0
  %v219 = vadd.f32 0.0, %v218
  %220 = vmatmul.f32.gmra.mxu0 %v49
  %v221 = vpop.f32.mrf.mxu0
  %v222 = vadd.f32 0.0, %v221
  %223 = vdwg.mxu0
  %224 = vrot.lane.b32.xlu0 %v219, 16
  %v225 = vpop.permute.xlu0 %224
  %v226 = vsel %vm78, %v225, %v219
  %227 = vrot.lane.b32.xlu0 %v222, 16
  %v228 = vpop.permute.xlu0 %227
  %v229 = vsel %vm78, %v228, %v222
  %230 = vrot.lane.b32.xlu0 %v226, 16
  %v231 = vpop.permute.xlu0 %230
  %232 = vrot.lane.b32.xlu0 %v229, 16
  %v233 = vpop.permute.xlu0 %232
  %v234 = vsel %vm78, %v231, %v219
  %v235 = vsel %vm78, %v233, %v222
  %238 = vrot.lane.b32.xlu0 %v234, 113
  %v239 = vpop.permute.xlu0 %238
  %240 = vrot.lane.b32.xlu0 %v235, 113
  %v241 = vpop.permute.xlu0 %240
  %v244 = vsel %vm92, %v239, 0.0
  %v245 = vsel %vm92, %v241, 0.0
  %v246 = vadd.f32 %v19, %v244
  %v247 = vadd.f32 %v24, %v245
  %248 = vmatpush.msra.mxu0 0.0
  %249 = vmatpush.msra.mxu0 0.0
  %250 = vmatpush.msra.mxu0 0.0
  %251 = vmatpush.msra.mxu0 0.0
  %252 = vmatpush.msra.mxu0 0.0
  %253 = vmatpush.msra.mxu0 0.0
  %254 = vmatpush.msra.mxu0 0.0
  %255 = vmatpush.msra.mxu0 0.0
  %256 = vmatpush.msra.mxu0 0.0
  %257 = vmatpush.msra.mxu0 0.0
  %258 = vmatpush.msra.mxu0 0.0
  %259 = vmatpush.msra.mxu0 0.0
  %260 = vmatpush.msra.mxu0 0.0
  %261 = vmatpush.msra.mxu0 0.0
  %262 = vmatpush.msra.mxu0 %v199
  %263 = vmatpush.msra.mxu0 %v196
  %264 = vmatmul.f32.gmra.mxu0 %v106
  %v265 = vpop.f32.mrf.mxu0
  %v266 = vadd.f32 0.0, %v265
  %267 = vmatmul.f32.gmra.mxu0 %v109
  %v268 = vpop.f32.mrf.mxu0
  %v269 = vadd.f32 0.0, %v268
  %270 = vdwg.mxu0
  %v271 = vadd.f32 %v246, %v266
  %v272 = vadd.f32 %v247, %v269
  %273 = vmatpush.msra.mxu0 0.0
  %274 = vmatpush.msra.mxu0 0.0
  %275 = vmatpush.msra.mxu0 0.0
  %276 = vmatpush.msra.mxu0 0.0
  %277 = vmatpush.msra.mxu0 0.0
  %278 = vmatpush.msra.mxu0 0.0
  %279 = vmatpush.msra.mxu0 0.0
  %280 = vmatpush.msra.mxu0 0.0
  %281 = vmatpush.msra.mxu0 0.0
  %282 = vmatpush.msra.mxu0 0.0
  %283 = vmatpush.msra.mxu0 0.0
  %284 = vmatpush.msra.mxu0 0.0
  %285 = vmatpush.msra.mxu0 0.0
  %286 = vmatpush.msra.mxu0 0.0
  %287 = vmatpush.msra.mxu0 %v199
  %288 = vmatpush.msra.mxu0 %v196
  %289 = vmatmul.f32.gmra.mxu0 %v137
  %v290 = vpop.f32.mrf.mxu0
  %v291 = vadd.f32 0.0, %v290
  %292 = vmatmul.f32.gmra.mxu0 %v140
  %v293 = vpop.f32.mrf.mxu0
  %v294 = vadd.f32 0.0, %v293
  %295 = vdwg.mxu0
  %296 = vrot.lane.b32.xlu0 %v291, 16
  %v297 = vpop.permute.xlu0 %296
  %v298 = vsel %vm78, %v297, %v291
  %299 = vrot.lane.b32.xlu0 %v294, 16
  %v300 = vpop.permute.xlu0 %299
  %v301 = vsel %vm78, %v300, %v294
  %302 = vrot.lane.b32.xlu0 %v298, 16
  %v303 = vpop.permute.xlu0 %302
  %304 = vrot.lane.b32.xlu0 %v301, 16
  %v305 = vpop.permute.xlu0 %304
  %v306 = vsel %vm78, %v303, %v291
  %v307 = vsel %vm78, %v305, %v294
  %310 = vrot.lane.b32.xlu0 %v306, 127
  %v311 = vpop.permute.xlu0 %310
  %312 = vrot.lane.b32.xlu0 %v307, 127
  %v313 = vpop.permute.xlu0 %312
  %v316 = vsel %vm178, %v311, 0.0
  %v317 = vsel %vm178, %v313, 0.0
  %v318 = vadd.f32 %v271, %v316
  %v319 = vadd.f32 %v272, %v317
  %s320 = scalar_lea.vmem %s3, 16
  %321 = vst.msk [vmem:[%s320] sm:$0xff] %vm191, %v318
  %322 = vst.msk [vmem:[%s320 + $0x8] sm:$0xf] %vm193, %v319
  // Predicated region
  $region14: #{tpu_custom_call.1} parent=0 // pred_check
    _
  $region15: #{tpu_custom_call.1} parent=0 // pred_check_branch
    %324 = sbr.rel (0) target = $region17
  $region16: #{tpu_custom_call.1} parent=0 // pred_region
    _
  $region17: #{tpu_custom_call.1} parent=0 // pred_fallthru
    _
  // Predicated region
  $region18: #{tpu_custom_call.1} parent=0 // pred_check
    _
  $region19: #{tpu_custom_call.1} parent=0 // pred_check_branch
    %326 = sbr.rel (0) target = $region21
  $region20: #{tpu_custom_call.1} parent=0 // pred_region
    _
  $region21: #{tpu_custom_call.1} parent=0 // pred_fallthru
    _

</llo_original>
